<compile_context>
chip_gen: v5e
topology: v5e:2x2
jax: 0.10.0
libtpu: 0.0.40
codegen_flags: <defaults>
</compile_context>

<pallas_src>
import jax
import jax.numpy as jnp
from jax.experimental import pallas as pl
from jax.experimental.pallas import tpu as pltpu


NEG_SLOPE = 0.01          # F.leaky_relu default negative_slope
LANE = 128                # TPU lane width
B_TILE_MAX = 2048         # max batch rows per grid step
COMPUTE_DTYPE = jnp.bfloat16


def _round_up(v, m):
    return (v + m - 1) // m * m


def _round_down(v, m):
    return max(m, (v // m) * m)


def _leaky_relu(x):
    return jnp.where(x > 0, x, NEG_SLOPE * x)


def mlp_kernel(x_ref, w1_ref, b1_ref, w2_ref, b2_ref, w3_ref, b3_ref, out_ref):
    # Cast to bf16 inside the kernel: x streams in the caller dtype, no extra
    # wrapper-side cast/pad pass over HBM.
    x = x_ref[...].astype(w1_ref.dtype)

    # fc1 + leaky_relu  (bf16 MXU operands, f32 accumulate, f32 epilogue)
    h1 = jnp.dot(x, w1_ref[...], preferred_element_type=jnp.float32)
    h1 = _leaky_relu(h1 + b1_ref[...])

    # fc2 + leaky_relu
    h2 = jnp.dot(h1.astype(w2_ref.dtype), w2_ref[...],
                 preferred_element_type=jnp.float32)
    h2 = _leaky_relu(h2 + b2_ref[...])

    # fc3 (no activation); lane-unpadded output, stored in the caller dtype
    out = jnp.dot(h2.astype(w3_ref.dtype), w3_ref[...],
                  preferred_element_type=jnp.float32)
    out_ref[...] = (out + b3_ref[...]).astype(out_ref.dtype)


def prepare_params(params, compute_dtype=COMPUTE_DTYPE):
    """One-time prep: transpose to (in, out) and cast to bf16.  Only the
    hidden (n_mid) dimension is zero-padded to a lane multiple; n_in / n_out
    stay un-padded (full-extent blocks are legal and cut HBM traffic).
    Zero-padded weight rows/cols + zero bias pad keep padded lanes exactly 0
    through leaky_relu, so padding never contaminates real outputs."""
    w1, b1 = params["w1"], params["b1"]
    w2, b2 = params["w2"], params["b2"]
    w3, b3 = params["w3"], params["b3"]
    n_in, n_mid, n_out = w1.shape[1], w1.shape[0], w3.shape[0]
    mid_p = _round_up(n_mid, LANE)

    def wt(w, rows, cols):
        wt_ = w.T.astype(compute_dtype)
        return jnp.pad(wt_, ((0, rows - wt_.shape[0]), (0, cols - wt_.shape[1])))

    def bias(b, cols):
        return jnp.pad(b.astype(jnp.float32), (0, cols - b.shape[0]))[None, :]

    return {
        "w1": wt(w1, n_in, mid_p),  "b1": bias(b1, mid_p),
        "w2": wt(w2, mid_p, mid_p), "b2": bias(b2, mid_p),
        "w3": wt(w3, mid_p, n_out), "b3": bias(b3, n_out),
        "dims": (n_in, n_mid, n_out, mid_p),
        "compute_dtype": compute_dtype,
    }


def _tpu_vmem_budget_and_cores():
    """Generation-aware usable-VMEM budget and an 'assume 2 TensorCores' flag."""
    cap = 128 * 1024 * 1024
    try:
        info = pltpu.get_tpu_info()
        cap = int(getattr(info, "vmem_capacity_bytes", cap))
    except Exception:
        pass
    budget = cap * 4 // 5                  # ~102 MiB on v5e/v6e, ~51 MiB on v7x
    two_cores = cap <= 64 * 1024 * 1024    # v7x-class: 64 MiB VMEM, 2 TCs/chip
    return budget, two_cores


def net_forward(x, prep):
    n_in, n_mid, n_out, mid_p = prep["dims"]
    cdt = prep["compute_dtype"]
    B = x.shape[0]
    x_sz = x.dtype.itemsize
    o_sz = x.dtype.itemsize
    w_sz = jnp.dtype(cdt).itemsize

    vmem_budget, two_cores = _tpu_vmem_budget_and_cores()

    # Resident weight/bias footprint.
    weight_bytes = (n_in * mid_p + mid_p * mid_p + mid_p * n_out) * w_sz
    bias_bytes = (2 * mid_p + n_out) * 4
    # Single-buffer the resident operands once they are big enough to matter:
    # constant-index_map blocks never need the default double buffer.
    single_buffer_weights = 2 * weight_bytes > vmem_budget // 4
    resident_bytes = weight_bytes * (1 if single_buffer_weights else 2) + 2 * bias_bytes

    # Per-batch-row VMEM cost: pipelined x/out tiles + in-kernel activations.
    per_row = (2 * n_in * x_sz + 2 * n_out * o_sz       # double-buffered x / out tiles
               + n_in * w_sz                            # bf16 copy of x
               + 2 * mid_p * (4 + w_sz)                 # h1, h2 (f32 + bf16 copies)
               + n_out * 4)                             # f32 result before the cast
    slack = 2 * 1024 * 1024                             # compiler-internal scratch
    avail = max(8 * per_row, vmem_budget - resident_bytes - slack)
    max_rows = _round_down(avail // per_row, 8)

    # Largest batch tile that fits the budget (multiple of 8, <= padded B).
    b_tile = min(B_TILE_MAX, _round_up(B, 8), max_rows)
    # v7x: guarantee >=2 grid steps so both TensorCores get work on the
    # "parallel" batch axis (no-op on 1-TC v5e/v6e).
    if two_cores and B >= 256 and pl.cdiv(B, b_tile) < 2:
        b_tile = max(8, _round_up(pl.cdiv(B, 2), 8))
    grid = (pl.cdiv(B, b_tile),)

    # Generation-aware VMEM limit, never below the actual requirement.
    need = resident_bytes + b_tile * per_row + slack
    vmem_limit = int(min(vmem_budget, max(need * 5 // 4, 16 * 1024 * 1024)))

    def resident(shape):
        if single_buffer_weights:
            return pl.BlockSpec(shape, lambda i: (0, 0),
                                pipeline_mode=pl.Buffered(1))
        return pl.BlockSpec(shape, lambda i: (0, 0))

    x_spec_kwargs = {}
    if b_tile >= 1024:
        # Deeper input pipeline hides the larger per-step DMA (cheap in VMEM).
        x_spec_kwargs["pipeline_mode"] = pl.Buffered(3)
    x_spec = pl.BlockSpec((b_tile, n_in), lambda i: (i, 0), **x_spec_kwargs)

    out = pl.pallas_call(
        mlp_kernel,
        out_shape=jax.ShapeDtypeStruct((B, n_out), x.dtype),
        grid=grid,
        in_specs=[
            x_spec,                                   # x tile (pipelined)
            resident((n_in, mid_p)),                  # w1 (VMEM resident)
            resident((1, mid_p)),                     # b1
            resident((mid_p, mid_p)),                 # w2
            resident((1, mid_p)),                     # b2
            resident((mid_p, n_out)),                 # w3
            resident((1, n_out)),                     # b3
        ],
        out_specs=pl.BlockSpec((b_tile, n_out), lambda i: (i, 0)),
        compiler_params=pltpu.CompilerParams(
            dimension_semantics=("parallel",),
            vmem_limit_bytes=vmem_limit,
        ),
    )(x, prep["w1"], prep["b1"], prep["w2"], prep["b2"], prep["w3"], prep["b3"])

    return out


def init_params(key, n_in, n_mid, n_out):
    """Deterministic PyTorch-Linear-style init (uniform +/- 1/sqrt(fan_in))."""
    ks = jax.random.split(key, 6)

    def linear(kw, kb, fan_in, fan_out):
        bound = 1.0 / jnp.sqrt(fan_in)
        w = jax.random.uniform(kw, (fan_out, fan_in), jnp.float32, -bound, bound)
        b = jax.random.uniform(kb, (fan_out,), jnp.float32, -bound, bound)
        return w, b

    w1, b1 = linear(ks[0], ks[1], n_in, n_mid)
    w2, b2 = linear(ks[2], ks[3], n_mid, n_mid)
    w3, b3 = linear(ks[4], ks[5], n_mid, n_out)
    return {"w1": w1, "b1": b1, "w2": w2, "b2": b2, "w3": w3, "b3": b3}


def _reference_f32(x, p):
    lrelu = lambda v: jnp.where(v > 0, v, NEG_SLOPE * v)
    h1 = lrelu(x @ p["w1"].T + p["b1"])
    h2 = lrelu(h1 @ p["w2"].T + p["b2"])
    return h2 @ p["w3"].T + p["b3"]


def _reference_bf16(x, p):
    # Emulates kernel numerics: bf16-quantized MXU operands, f32 accum/epilogue.
    q = lambda a: a.astype(jnp.bfloat16).astype(jnp.float32)
    lrelu = lambda v: jnp.where(v > 0, v, NEG_SLOPE * v)
    h1 = lrelu(q(x) @ q(p["w1"].T) + p["b1"])
    h2 = lrelu(q(h1) @ q(p["w2"].T) + p["b2"])
    return q(h2) @ q(p["w3"].T) + p["b3"]


if __name__ == "__main__":
    key = jax.random.PRNGKey(0)
    k_x, k_p = jax.random.split(key)

    B, n_in, n_mid, n_out = 8, 32, 64, 16
    x = jax.random.normal(k_x, (B, n_in), jnp.float32)
    params = init_params(k_p, n_in, n_mid, n_out)

    prep = prepare_params(params)          # one-time transpose/pad/cast
    out = net_forward(x, prep)
    jax.block_until_ready(out)

    assert out.shape == (B, n_out)
    assert out.dtype == x.dtype
    # Tight check vs. a bf16-emulated reference, loose check vs. pure f32.
    assert jnp.allclose(out, _reference_bf16(x, params), atol=2e-3, rtol=2e-3)
    assert jnp.allclose(out, _reference_f32(x, params), atol=5e-2, rtol=5e-2)

    print("KERNEL_OK")
</pallas_src>

<mosaic_0001>
module attributes {stable_mosaic.version = 11 : i64} {
  func.func @mlp_kernel(%arg0: i32, %arg1: memref<8x32xf32, #tpu.memory_space<vmem>>, %arg2: memref<32x128xbf16, #tpu.memory_space<vmem>>, %arg3: memref<1x128xf32, #tpu.memory_space<vmem>>, %arg4: memref<128x128xbf16, #tpu.memory_space<vmem>>, %arg5: memref<1x128xf32, #tpu.memory_space<vmem>>, %arg6: memref<128x16xbf16, #tpu.memory_space<vmem>>, %arg7: memref<1x16xf32, #tpu.memory_space<vmem>>, %arg8: memref<8x16xf32, #tpu.memory_space<vmem>>) attributes {dimension_semantics = [#tpu.dimension_semantics<parallel>], iteration_bounds = array<i64: 1>, scalar_prefetch = 0 : i64, scratch_operands = 0 : i64, tpu.core_type = #tpu.core_type<tc>, window_params = [{transform_indices = @transform_0, window_bounds = array<i64: 8, 32>}, {pipeline_mode = #tpu.pipeline_mode<synchronous>, transform_indices = @transform_1, window_bounds = array<i64: 32, 128>}, {pipeline_mode = #tpu.pipeline_mode<synchronous>, transform_indices = @transform_2, window_bounds = array<i64: 1, 128>}, {pipeline_mode = #tpu.pipeline_mode<synchronous>, transform_indices = @transform_3, window_bounds = array<i64: 128, 128>}, {pipeline_mode = #tpu.pipeline_mode<synchronous>, transform_indices = @transform_4, window_bounds = array<i64: 1, 128>}, {pipeline_mode = #tpu.pipeline_mode<synchronous>, transform_indices = @transform_5, window_bounds = array<i64: 128, 16>}, {pipeline_mode = #tpu.pipeline_mode<synchronous>, transform_indices = @transform_6, window_bounds = array<i64: 1, 16>}, {transform_indices = @transform_7, window_bounds = array<i64: 8, 16>}]} {
    %c0 = arith.constant 0 : index
    %c0_0 = arith.constant 0 : index
    %0 = vector.load %arg1[%c0, %c0_0] : memref<8x32xf32, #tpu.memory_space<vmem>>, vector<8x32xf32>
    %1 = arith.truncf %0 : vector<8x32xf32> to vector<8x32xbf16>
    %c0_1 = arith.constant 0 : index
    %c0_2 = arith.constant 0 : index
    %2 = vector.load %arg2[%c0_1, %c0_2] : memref<32x128xbf16, #tpu.memory_space<vmem>>, vector<32x128xbf16>
    %cst = arith.constant dense<0.000000e+00> : vector<8x128xf32>
    %3 = tpu.matmul %1, %2, %cst {dimension_numbers = #tpu.dot_dimension_numbers<[1], [0], [0], [1], [0, 0, 1, 1], [], []>} : vector<8x32xbf16>, vector<32x128xbf16>, vector<8x128xf32> -> vector<8x128xf32>
    %c0_3 = arith.constant 0 : index
    %c0_4 = arith.constant 0 : index
    %4 = vector.load %arg3[%c0_3, %c0_4] : memref<1x128xf32, #tpu.memory_space<vmem>>, vector<1x128xf32>
    %5 = vector.broadcast %4 : vector<1x128xf32> to vector<8x128xf32>
    %6 = arith.addf %3, %5 : vector<8x128xf32>
    %cst_5 = arith.constant 0.000000e+00 : f32
    %7 = vector.broadcast %cst_5 : f32 to vector<8x128xf32>
    %8 = arith.cmpf ogt, %6, %7 : vector<8x128xf32>
    %cst_6 = arith.constant 0.00999999977 : f32
    %9 = vector.broadcast %cst_6 : f32 to vector<8x128xf32>
    %10 = arith.mulf %9, %6 : vector<8x128xf32>
    %11 = arith.select %8, %6, %10 : vector<8x128xi1>, vector<8x128xf32>
    %12 = arith.truncf %11 : vector<8x128xf32> to vector<8x128xbf16>
    %c0_7 = arith.constant 0 : index
    %c0_8 = arith.constant 0 : index
    %13 = vector.load %arg4[%c0_7, %c0_8] : memref<128x128xbf16, #tpu.memory_space<vmem>>, vector<128x128xbf16>
    %cst_9 = arith.constant dense<0.000000e+00> : vector<8x128xf32>
    %14 = tpu.matmul %12, %13, %cst_9 {dimension_numbers = #tpu.dot_dimension_numbers<[1], [0], [0], [1], [0, 0, 1, 1], [], []>} : vector<8x128xbf16>, vector<128x128xbf16>, vector<8x128xf32> -> vector<8x128xf32>
    %c0_10 = arith.constant 0 : index
    %c0_11 = arith.constant 0 : index
    %15 = vector.load %arg5[%c0_10, %c0_11] : memref<1x128xf32, #tpu.memory_space<vmem>>, vector<1x128xf32>
    %16 = vector.broadcast %15 : vector<1x128xf32> to vector<8x128xf32>
    %17 = arith.addf %14, %16 : vector<8x128xf32>
    %cst_12 = arith.constant 0.000000e+00 : f32
    %18 = vector.broadcast %cst_12 : f32 to vector<8x128xf32>
    %19 = arith.cmpf ogt, %17, %18 : vector<8x128xf32>
    %cst_13 = arith.constant 0.00999999977 : f32
    %20 = vector.broadcast %cst_13 : f32 to vector<8x128xf32>
    %21 = arith.mulf %20, %17 : vector<8x128xf32>
    %22 = arith.select %19, %17, %21 : vector<8x128xi1>, vector<8x128xf32>
    %23 = arith.truncf %22 : vector<8x128xf32> to vector<8x128xbf16>
    %c0_14 = arith.constant 0 : index
    %c0_15 = arith.constant 0 : index
    %24 = vector.load %arg6[%c0_14, %c0_15] : memref<128x16xbf16, #tpu.memory_space<vmem>>, vector<128x16xbf16>
    %cst_16 = arith.constant dense<0.000000e+00> : vector<8x16xf32>
    %25 = tpu.matmul %23, %24, %cst_16 {dimension_numbers = #tpu.dot_dimension_numbers<[1], [0], [0], [1], [0, 0, 1, 1], [], []>} : vector<8x128xbf16>, vector<128x16xbf16>, vector<8x16xf32> -> vector<8x16xf32>
    %c0_17 = arith.constant 0 : index
    %c0_18 = arith.constant 0 : index
    %26 = vector.load %arg7[%c0_17, %c0_18] : memref<1x16xf32, #tpu.memory_space<vmem>>, vector<1x16xf32>
    %27 = vector.broadcast %26 : vector<1x16xf32> to vector<8x16xf32>
    %28 = arith.addf %25, %27 : vector<8x16xf32>
    %c0_19 = arith.constant 0 : index
    %c0_20 = arith.constant 0 : index
    %29 = vector.load %arg8[%c0_19, %c0_20] : memref<8x16xf32, #tpu.memory_space<vmem>>, vector<8x16xf32>
    tpu.vector_store %arg8[%c0_19, %c0_20], %28 {strides = array<i32>} : memref<8x16xf32, #tpu.memory_space<vmem>>, vector<8x16xf32>,
    return
  }
  func.func @transform_0(%arg0: i32) -> (i32, i32) {
    %c0_i32 = arith.constant 0 : i32
    %c0_i32_0 = arith.constant 0 : i32
    return %arg0, %c0_i32 : i32, i32
  }
  func.func @transform_1(%arg0: i32) -> (i32, i32) {
    %c0_i32 = arith.constant 0 : i32
    %c0_i32_0 = arith.constant 0 : i32
    %c0_i32_1 = arith.constant 0 : i32
    return %c0_i32, %c0_i32_0 : i32, i32
  }
  func.func @transform_2(%arg0: i32) -> (i32, i32) {
    %c0_i32 = arith.constant 0 : i32
    %c0_i32_0 = arith.constant 0 : i32
    %c0_i32_1 = arith.constant 0 : i32
    return %c0_i32, %c0_i32_0 : i32, i32
  }
  func.func @transform_3(%arg0: i32) -> (i32, i32) {
    %c0_i32 = arith.constant 0 : i32
    %c0_i32_0 = arith.constant 0 : i32
    %c0_i32_1 = arith.constant 0 : i32
    return %c0_i32, %c0_i32_0 : i32, i32
  }
  func.func @transform_4(%arg0: i32) -> (i32, i32) {
    %c0_i32 = arith.constant 0 : i32
    %c0_i32_0 = arith.constant 0 : i32
    %c0_i32_1 = arith.constant 0 : i32
    return %c0_i32, %c0_i32_0 : i32, i32
  }
  func.func @transform_5(%arg0: i32) -> (i32, i32) {
    %c0_i32 = arith.constant 0 : i32
    %c0_i32_0 = arith.constant 0 : i32
    %c0_i32_1 = arith.constant 0 : i32
    return %c0_i32, %c0_i32_0 : i32, i32
  }
  func.func @transform_6(%arg0: i32) -> (i32, i32) {
    %c0_i32 = arith.constant 0 : i32
    %c0_i32_0 = arith.constant 0 : i32
    %c0_i32_1 = arith.constant 0 : i32
    return %c0_i32, %c0_i32_0 : i32, i32
  }
  func.func @transform_7(%arg0: i32) -> (i32, i32) {
    %c0_i32 = arith.constant 0 : i32
    %c0_i32_0 = arith.constant 0 : i32
    return %arg0, %c0_i32 : i32, i32
  }
}

</mosaic_0001>

<llo_original>
// kernel: tpu_custom_call.1
$region0: #{tpu_custom_call.1}
  #allocation0 [shape = 'u32[]', space=smem, size = 0x4, offset = 0x4, fixed_abs, tag = 'smem constant byte address 0x4 - core index']
  #allocation1 [shape = 'u32[72,128]{1,0:T(1,128)}', space=vmem, size = 0x9000, scoped, tag = 'internal scratch']
  %s0 = inlined_call_operand.vmem [shape: f32[8,32], index: 0, kind: input, shape index: {}]
  %s1 = inlined_call_operand.hbm [shape: bf16[32,128], index: 1, kind: input, shape index: {}]
  %s2 = inlined_call_operand.vmem [shape: f32[1,128], index: 2, kind: input, shape index: {}]
  %s3 = inlined_call_operand.vmem [shape: bf16[128,128], index: 3, kind: input, shape index: {}]
  %s4 = inlined_call_operand.vmem [shape: f32[1,128], index: 4, kind: input, shape index: {}]
  %s5 = inlined_call_operand.vmem [shape: bf16[128,16], index: 5, kind: input, shape index: {}]
  %s6 = inlined_call_operand.vmem [shape: f32[1,16], index: 6, kind: input, shape index: {}]
  %s7 = inlined_call_operand.hbm [shape: f32[8,16], index: 7, kind: output, shape index: {}]
  %s8 = sld [smem:[#allocation0]]
  $region42: #{tpu_custom_call.1} parent=0
    _
  %s10 = ssub.s32 1, %s8
  %s11 = scalar_select 0, %s10, %s8
  $region1: #{tpu_custom_call.1} parent=0
    #allocation2 [shape = 'u8[8192]{0}', space=vmem, size = 0x2000, scoped, tag = 'input window, operand 1, single buffered']
    #allocation3 [shape = 's32[1]{0}', space=sflag, size = 0x4, scoped, tag = 'scoped memory for tpu_custom_call.1']
    #allocation4 [shape = 's32[1]{0}', space=sflag, size = 0x4, scoped, tag = 'scoped memory for tpu_custom_call.1']
    #allocation5 [shape = 'u8[4096]{0}', space=vmem, size = 0x1000, scoped, tag = 'output window, operand 0, single buffered']
    %12 = vsyncpa [#allocation3], 0
    %13 = vsyncpa [#allocation4], 0
    // Predicated region
    $region2: #{tpu_custom_call.1} parent=1 // pred_check
      _
    $region3: #{tpu_custom_call.1} parent=1 // pred_check_branch
      %15 = sbr.rel (0) target = $region5
    $region4: #{tpu_custom_call.1} parent=1 // pred_region
      _
    $region5: #{tpu_custom_call.1} parent=1 // pred_fallthru
      _
    // Predicated region
    $region6: #{tpu_custom_call.1} parent=1 // pred_check
      _
    $region7: #{tpu_custom_call.1} parent=1 // pred_check_branch
      %17 = sbr.rel (0) target = $region9
    $region8: #{tpu_custom_call.1} parent=1 // pred_region
      %19 = vsyncadd [#allocation3], 0
      %s20 = sshll.u32 %s1, 4
      %s21 = int_to_ptr.hbm [resolvable:$true] %s20
      %s22 = sshll.u32 [#allocation2], 4
      %s23 = int_to_ptr.vmem [resolvable:$true] %s22
      %28 = dma.hbm_to_vmem [thread:$0]  %s21, 256, %s23, [#allocation3], 64, 64, 4
    $region9: #{tpu_custom_call.1} parent=1 // pred_fallthru
      _
    // Predicated region
    $region10: #{tpu_custom_call.1} parent=1 // pred_check
      _
    $region11: #{tpu_custom_call.1} parent=1 // pred_check_branch
      %30 = sbr.rel (0) target = $region13
    $region12: #{tpu_custom_call.1} parent=1 // pred_region
      _
    $region13: #{tpu_custom_call.1} parent=1 // pred_fallthru
      _
    // Predicated region
    $region14: #{tpu_custom_call.1} parent=1 // pred_check
      _
    $region15: #{tpu_custom_call.1} parent=1 // pred_check_branch
      %32 = sbr.rel (0) target = $region17
    $region16: #{tpu_custom_call.1} parent=1 // pred_region
      _
    $region17: #{tpu_custom_call.1} parent=1 // pred_fallthru
      _
    // Predicated region
    $region18: #{tpu_custom_call.1} parent=1 // pred_check
      _
    $region19: #{tpu_custom_call.1} parent=1 // pred_check_branch
      %34 = sbr.rel (0) target = $region21
    $region20: #{tpu_custom_call.1} parent=1 // pred_region
      _
    $region21: #{tpu_custom_call.1} parent=1 // pred_fallthru
      _
    // Predicated region
    $region22: #{tpu_custom_call.1} parent=1 // pred_check
      _
    $region23: #{tpu_custom_call.1} parent=1 // pred_check_branch
      %36 = sbr.rel (0) target = $region25
    $region24: #{tpu_custom_call.1} parent=1 // pred_region
      _
    $region25: #{tpu_custom_call.1} parent=1 // pred_fallthru
      _
    // Predicated region
    $region26: #{tpu_custom_call.1} parent=1 // pred_check
      _
    $region27: #{tpu_custom_call.1} parent=1 // pred_check_branch
      %38 = sbr.rel (0) target = $region29
    $region28: #{tpu_custom_call.1} parent=1 // pred_region
      _
    $region29: #{tpu_custom_call.1} parent=1 // pred_fallthru
      _
    // Predicated region
    $region30: #{tpu_custom_call.1} parent=1 // pred_check
      _
    $region31: #{tpu_custom_call.1} parent=1 // pred_check_branch
      %40 = sbr.rel (0) target = $region33
    $region32: #{tpu_custom_call.1} parent=1 // pred_region
      %42 = dma.done [#allocation3], 256
    $region33: #{tpu_custom_call.1} parent=1 // pred_fallthru
      _
    %v44 = vld [vmem:[%s0] sm:$0xff]
    %v45 = vpack.c.bf16 %v44, %v44
    %v46 = vld [vmem:[#allocation2] sm:$0xf]
    %v47 = vld [vmem:[#allocation2 + $0x4] sm:$0xf]
    %v48 = vld [vmem:[#allocation2 + $0x8] sm:$0xf]
    %v49 = vld [vmem:[#allocation2 + $0xc] sm:$0xf]
    %v50 = vld [vmem:[%s2] sm:$0x1]
    %v52 = vperm.slane %v50, 0
    %v58 = vunpack.c.l.b16 %v46
    %v59 = vunpack.c.l.b16 %v47
    %v60 = vunpack.c.l.b16 %v48
    %v61 = vunpack.c.l.b16 %v49
    %v62 = vpack.c.b16 %v59, %v58
    %v63 = vpack.c.b16 %v61, %v60
    %vm66 = vcmask 261120
    %v68 = vsel %vm66, %v45, 0
    %70 = vmatpush.bf16.msra.mxu0 0
    %71 = vmatpush.bf16.msra.mxu0 0
    %72 = vmatpush.bf16.msra.mxu0 0
    %73 = vmatpush.bf16.msra.mxu0 0
    %74 = vmatpush.bf16.msra.mxu0 0
    %75 = vmatpush.bf16.msra.mxu0 0
    %76 = vmatpush.bf16.msra.mxu0 %v63
    %77 = vmatpush.bf16.msra.mxu0 %v62
    %78 = vmatmul.bf16.gmra.mxu0 %v68
    %v79 = vpop.f32.mrf.mxu0
    %v80 = vadd.f32 %v52, %v79
    %v81 = vpop.f32.mrf.mxu0
    %82 = vdwg.mxu0
    %vm83 = vcmp.gt.f32.partialorder %v80, 0.0
    %v84 = vmul.f32 %v80, 0.01
    %v85 = vsel %vm83, %v80, %v84
    %v86 = vpack.c.bf16 %v85, %v85
    %v87 = vld [vmem:[%s3] sm:$0xf]
    %v88 = vld [vmem:[%s3 + $0x4] sm:$0xf]
    %v89 = vld [vmem:[%s3 + $0x8] sm:$0xf]
    %v90 = vld [vmem:[%s3 + $0xc] sm:$0xf]
    %v91 = vld [vmem:[%s3 + $0x10] sm:$0xf]
    %v92 = vld [vmem:[%s3 + $0x14] sm:$0xf]
    %v93 = vld [vmem:[%s3 + $0x18] sm:$0xf]
    %v94 = vld [vmem:[%s3 + $0x1c] sm:$0xf]
    %v95 = vld [vmem:[%s3 + $0x20] sm:$0xf]
    %v96 = vld [vmem:[%s3 + $0x24] sm:$0xf]
    %v97 = vld [vmem:[%s3 + $0x28] sm:$0xf]
    %v98 = vld [vmem:[%s3 + $0x2c] sm:$0xf]
    %v99 = vld [vmem:[%s3 + $0x30] sm:$0xf]
    %v100 = vld [vmem:[%s3 + $0x34] sm:$0xf]
    %v101 = vld [vmem:[%s3 + $0x38] sm:$0xf]
    %v102 = vld [vmem:[%s3 + $0x3c] sm:$0xf]
    %v103 = vld [vmem:[%s4] sm:$0x1]
    %v105 = vperm.slane %v103, 0
    %v123 = vunpack.c.l.b16 %v87
    %v124 = vunpack.c.l.b16 %v88
    %v125 = vunpack.c.l.b16 %v89
    %v126 = vunpack.c.l.b16 %v90
    %v127 = vunpack.c.l.b16 %v91
    %v128 = vunpack.c.l.b16 %v92
    %v129 = vunpack.c.l.b16 %v93
    %v130 = vunpack.c.l.b16 %v94
    %v131 = vunpack.c.l.b16 %v95
    %v132 = vunpack.c.l.b16 %v96
    %v133 = vunpack.c.l.b16 %v97
    %v134 = vunpack.c.l.b16 %v98
    %v135 = vunpack.c.l.b16 %v99
    %v136 = vunpack.c.l.b16 %v100
    %v137 = vunpack.c.l.b16 %v101
    %v138 = vunpack.c.l.b16 %v102
    %v139 = vpack.c.b16 %v124, %v123
    %v140 = vpack.c.b16 %v126, %v125
    %v141 = vpack.c.b16 %v128, %v127
    %v142 = vpack.c.b16 %v130, %v129
    %v143 = vpack.c.b16 %v132, %v131
    %v144 = vpack.c.b16 %v134, %v133
    %v145 = vpack.c.b16 %v136, %v135
    %v146 = vpack.c.b16 %v138, %v137
    %155 = vmatpush.bf16.msra.mxu0 %v146
    %156 = vmatpush.bf16.msra.mxu0 %v145
    %157 = vmatpush.bf16.msra.mxu0 %v144
    %158 = vmatpush.bf16.msra.mxu0 %v143
    %159 = vmatpush.bf16.msra.mxu0 %v142
    %160 = vmatpush.bf16.msra.mxu0 %v141
    %161 = vmatpush.bf16.msra.mxu0 %v140
    %162 = vmatpush.bf16.msra.mxu0 %v139
    %163 = vmatmul.bf16.gmra.mxu0 %v86
    %v164 = vpop.f32.mrf.mxu0
    %v165 = vadd.f32 %v105, %v164
    %v166 = vpop.f32.mrf.mxu0
    %167 = vdwg.mxu0
    %vm168 = vcmp.gt.f32.partialorder %v165, 0.0
    %v169 = vmul.f32 %v165, 0.01
    %v170 = vsel %vm168, %v165, %v169
    %v171 = vpack.c.bf16 %v170, %v170
    %v172 = vld [vmem:[%s5] sm:$0xf]
    %v173 = vld [vmem:[%s5 + $0x4] sm:$0xf]
    %v174 = vld [vmem:[%s5 + $0x8] sm:$0xf]
    %v175 = vld [vmem:[%s5 + $0xc] sm:$0xf]
    %v176 = vld [vmem:[%s5 + $0x10] sm:$0xf]
    %v177 = vld [vmem:[%s5 + $0x14] sm:$0xf]
    %v178 = vld [vmem:[%s5 + $0x18] sm:$0xf]
    %v179 = vld [vmem:[%s5 + $0x1c] sm:$0xf]
    %v180 = vld [vmem:[%s5 + $0x20] sm:$0xf]
    %v181 = vld [vmem:[%s5 + $0x24] sm:$0xf]
    %v182 = vld [vmem:[%s5 + $0x28] sm:$0xf]
    %v183 = vld [vmem:[%s5 + $0x2c] sm:$0xf]
    %v184 = vld [vmem:[%s5 + $0x30] sm:$0xf]
    %v185 = vld [vmem:[%s5 + $0x34] sm:$0xf]
    %v186 = vld [vmem:[%s5 + $0x38] sm:$0xf]
    %v187 = vld [vmem:[%s5 + $0x3c] sm:$0xf]
    %v188 = vld [vmem:[%s6] sm:$0x1]
    %v190 = vperm.slane %v188, 0
    %v208 = vunpack.c.l.b16 %v172
    %v209 = vunpack.c.l.b16 %v173
    %v210 = vunpack.c.l.b16 %v174
    %v211 = vunpack.c.l.b16 %v175
    %v212 = vunpack.c.l.b16 %v176
    %v213 = vunpack.c.l.b16 %v177
    %v214 = vunpack.c.l.b16 %v178
    %v215 = vunpack.c.l.b16 %v179
    %v216 = vunpack.c.l.b16 %v180
    %v217 = vunpack.c.l.b16 %v181
    %v218 = vunpack.c.l.b16 %v182
    %v219 = vunpack.c.l.b16 %v183
    %v220 = vunpack.c.l.b16 %v184
    %v221 = vunpack.c.l.b16 %v185
    %v222 = vunpack.c.l.b16 %v186
    %v223 = vunpack.c.l.b16 %v187
    %v224 = vpack.c.b16 %v209, %v208
    %v225 = vpack.c.b16 %v211, %v210
    %v226 = vpack.c.b16 %v213, %v212
    %v227 = vpack.c.b16 %v215, %v214
    %v228 = vpack.c.b16 %v217, %v216
    %v229 = vpack.c.b16 %v219, %v218
    %v230 = vpack.c.b16 %v221, %v220
    %v231 = vpack.c.b16 %v223, %v222
    %240 = vmatpush.bf16.msra.mxu0 %v231
    %241 = vmatpush.bf16.msra.mxu0 %v230
    %242 = vmatpush.bf16.msra.mxu0 %v229
    %243 = vmatpush.bf16.msra.mxu0 %v228
    %244 = vmatpush.bf16.msra.mxu0 %v227
    %245 = vmatpush.bf16.msra.mxu0 %v226
    %246 = vmatpush.bf16.msra.mxu0 %v225
    %247 = vmatpush.bf16.msra.mxu0 %v224
    %248 = vmatmul.bf16.gmra.mxu0 %v171
    %v249 = vpop.f32.mrf.mxu0
    %v250 = vadd.f32 %v190, %v249
    %v251 = vpop.f32.mrf.mxu0
    %252 = vdwg.mxu0
    %vm253 = vcmask 130048
    %254 = vst.msk [vmem:[#allocation5] sm:$0xff] %vm253, %v250
    // Predicated region
    $region34: #{tpu_custom_call.1} parent=1 // pred_check
      _
    $region35: #{tpu_custom_call.1} parent=1 // pred_check_branch
      %256 = sbr.rel (0) target = $region37
    $region36: #{tpu_custom_call.1} parent=1 // pred_region
      %258 = vsyncadd [#allocation4], 0
      %s260 = sshll.u32 [#allocation5], 4
      %s261 = int_to_ptr.vmem [resolvable:$true] %s260
      %s262 = sshll.u32 %s7, 4
      %s263 = int_to_ptr.hbm [resolvable:$true] %s262
      %265 = dma.vmem_to_hbm [thread:$0]  %s261, 128, %s263, [#allocation4]
    $region37: #{tpu_custom_call.1} parent=1 // pred_fallthru
      _
    // Predicated region
    $region38: #{tpu_custom_call.1} parent=1 // pred_check
      _
    $region39: #{tpu_custom_call.1} parent=1 // pred_check_branch
      %267 = sbr.rel (0) target = $region41
    $region40: #{tpu_custom_call.1} parent=1 // pred_region
      %269 = dma.done [#allocation4], 128
    $region41: #{tpu_custom_call.1} parent=1 // pred_fallthru
      _
    %270 = vsyncpa [#allocation3], 1
    %271 = vsyncpa [#allocation4], 1

</llo_original>
